<compile_context>
chip_gen: v7x
topology: tpu7x:2x2x1
jax: 0.10.0
libtpu: 0.0.40
codegen_flags: <defaults>
</compile_context>

<pallas_src>
import functools

import jax
import jax.numpy as jnp
from jax.experimental import pallas as pl
from jax.experimental.pallas import tpu as pltpu


def _hist_kernel(x_ref, o_ref, acc_ref, *, edges_scaled, inv_two_sigma,
                 half_inv_total, num_bins):
    """Soft-histogram hot path.

    x_ref:   VMEM [tm, tp]  compute-dtype input tile (rows x pixel chunk)
    o_ref:   VMEM f32[tm, num_bins]  per-row normalized (partial) histogram
    acc_ref: VMEM f32[tm, num_bins]  running per-bin row sums
    """
    pj = pl.program_id(2)                          # pixel (reduction) axis

    @pl.when(pj == 0)
    def _():
        acc_ref[...] = jnp.zeros_like(acc_ref)

    # Hoisted 1/(2*sigma): one VPU multiply per pixel; every edge argument
    # below is then a single subtract against a trace-time constant
    # (weak-typed Python float -> stays in the compute dtype, bf16 or f32).
    x_s = x_ref[...] * inv_two_sigma               # [tm, tp]

    # Streamed edge loop: tanh is the single EUP op per edge; the adjacent
    # difference (VPU, rides in slack) is taken per step per bin, upcast to
    # f32 only for the lane reduce / accumulation.  Only prev/nxt [tm, tp]
    # temporaries are live at once.
    prev = jnp.tanh(x_s - edges_scaled[0])         # EUP (the binding unit)
    cols = []
    for k in range(num_bins):                      # static, unrolled at trace
        nxt = jnp.tanh(x_s - edges_scaled[k + 1])
        diff = (prev - nxt).astype(jnp.float32)    # exactly 0 on pad lanes
        cols.append(jnp.sum(diff, axis=1, keepdims=True))   # XLU [tm, 1]
        prev = nxt
    acc_ref[...] += jnp.concatenate(cols, axis=1)  # [tm, K] f32

    @pl.when(pj == pl.num_programs(2) - 1)
    def _():
        # 0.5 from the sigmoid->tanh identity folded into the normalization;
        # divide by the FULL real pixel count (not the padded block width).
        o_ref[...] = (acc_ref[...] * half_inv_total).astype(o_ref.dtype)


def _round_up(n, m):
    return ((n + m - 1) // m) * m


def _pick_tile(n, target, align):
    """Largest tile <= target that is a multiple of `align` and divides n.
    Callers pre-pad n to a multiple of `align`, so `align` always works."""
    if n <= target:
        return n
    t = (target // align) * align
    while t >= align:
        if n % t == 0:
            return t
        t -= align
    return n


def _device_caps():
    """(bf16_fast_path_ok, multi_tensorcore_chip) from the default device."""
    kind = ""
    try:
        kind = jax.devices()[0].device_kind.lower()
    except Exception:  # pragma: no cover - be conservative off-TPU
        pass
    bf16_ok = ("v6" in kind) or ("v7" in kind) or ("7x" in kind)
    multi_tc = ("v7" in kind) or ("7x" in kind)
    return bf16_ok, multi_tc


def hist_layer(x, *, num_bins, min_val, max_val, sigma, compute_dtype=None):
    """x: f32[B, C, H, W] (NCHW). Returns f32[B, C, num_bins]."""
    assert num_bins >= 2, "need at least 2 bins for a linspace of centers"
    B, C, H, W = x.shape
    M, P = B * C, H * W

    bf16_ok, multi_tc = _device_caps()
    if compute_dtype is None:
        # bf16 EUP/VPU fast path only where the hardware has it (v6e/v7x).
        compute_dtype = jnp.bfloat16 if bf16_ok else jnp.float32
    compute_dtype = jnp.dtype(compute_dtype)

    sigma = float(sigma)
    L = (float(max_val) - float(min_val)) / (num_bins - 1)
    # Shared bin edges, pre-scaled by 1/(2*sigma), baked as trace-time Python
    # constants.  Edge-sharing is exact only because the module's centers come
    # from a uniform linspace (guaranteed by construction here).
    edges_scaled = tuple(
        float((min_val + (j - 0.5) * L) / (2.0 * sigma))
        for j in range(num_bins + 1))
    inv_two_sigma = 1.0 / (2.0 * sigma)
    half_inv_total = 0.5 / float(P)

    # ---- Row (sublane) padding / tiling ------------------------------------
    row_align = 16 if compute_dtype == jnp.bfloat16 else 8
    M_pad = _round_up(M, row_align)
    tm = _pick_tile(M_pad, 256, row_align)
    n_row_tiles = M_pad // tm

    # ---- Megacore (v7x): if only one row tile, split pixels into parallel
    # chunks whose partial histograms are summed in the wrapper. -------------
    n_chunks = 2 if (multi_tc and n_row_tiles < 2 and P >= 256) else 1

    # ---- Pixel (lane) padding / tiling: bounded tiles on every generation,
    # pad lanes carry a sentinel so every edge tanh is exactly -1 there. -----
    pc_raw = -(-P // n_chunks)                     # ceil
    tp = min(2048, _round_up(pc_raw, 128))
    Pc = _round_up(pc_raw, tp)
    P_pad = n_chunks * Pc
    steps_per_chunk = Pc // tp

    # Sentinel: (pad - edge)/(2*sigma) <= -25 for every edge -> tanh == -1.0
    # exactly (f32 and bf16), so adjacent differences contribute exactly 0.
    pad_val = float(min_val) - L - 50.0 * sigma

    x_flat = x.reshape(M, P).astype(compute_dtype)
    if (M_pad, P_pad) != (M, P):
        x_flat = jnp.pad(x_flat, ((0, M_pad - M), (0, P_pad - P)),
                         constant_values=pad_val)

    kernel = functools.partial(
        _hist_kernel,
        edges_scaled=edges_scaled,
        inv_two_sigma=inv_two_sigma,
        half_inv_total=half_inv_total,
        num_bins=num_bins,
    )

    cost = pl.CostEstimate(
        flops=3 * M_pad * P_pad * (num_bins + 1),
        transcendentals=M_pad * P_pad * (num_bins + 1),
        bytes_accessed=(x_flat.dtype.itemsize * M_pad * P_pad
                        + 4 * n_chunks * M_pad * num_bins),
    )

    out = pl.pallas_call(
        kernel,
        out_shape=jax.ShapeDtypeStruct((n_chunks, M_pad, num_bins),
                                       jnp.float32),
        grid=(n_chunks, n_row_tiles, steps_per_chunk),
        in_specs=[pl.BlockSpec(
            (tm, tp),
            lambda c, i, j: (i, c * steps_per_chunk + j))],
        # Same output block across the pixel axis -> resident per-(chunk,row)
        # tile; leading chunk dim squeezed out of the kernel view.
        out_specs=pl.BlockSpec((None, tm, num_bins),
                               lambda c, i, j: (c, i, 0)),
        scratch_shapes=[pltpu.VMEM((tm, num_bins), jnp.float32)],
        compiler_params=pltpu.CompilerParams(
            # chunk + row axes parallel (shards across v7x's 2 TCs; neutral on
            # single-TC v5e/v6e), pixel/reduction axis last and arbitrary.
            dimension_semantics=("parallel", "parallel", "arbitrary"),
            vmem_limit_bytes=32 * 1024 * 1024),
        cost_estimate=cost,
    )(x_flat)

    hist = jnp.sum(out, axis=0)[:M]        # sum chunk partials, drop pad rows
    return hist.reshape(B, C, num_bins)


def _hist_layer_ref(x, *, num_bins, min_val, max_val, sigma):
    """Plain-JAX reference (direct transcription of [1]) for checking."""
    centers = jnp.linspace(min_val, max_val, num_bins, dtype=jnp.float32)
    L = (max_val - min_val) / (num_bins - 1)
    d = x[..., None] - centers                       # [B, C, H, W, K]
    phi = (jax.nn.sigmoid((d + L / 2) / sigma)
           - jax.nn.sigmoid((d - L / 2) / sigma))
    return jnp.mean(phi, axis=(2, 3))                # [B, C, K]


if __name__ == "__main__":
    # Deterministic "buffers" of the module (synthetic, no checkpoint).
    NUM_BINS = 8
    MIN_VAL = 0.0
    MAX_VAL = 1.0
    SIGMA = (MAX_VAL - MIN_VAL) / (NUM_BINS - 1) / 2.5   # W = L / 2.5 as in [1]
    # TODO(synk): the original __init__ builds nn.Conv2d() per bin with no
    # arguments (broken); we realize the intended per-bin (x - mu_k) affine
    # directly as baked edge constants in the kernel instead of conv weights.

    key = jax.random.PRNGKey(0)
    x = jax.random.uniform(key, (2, 4, 16, 16), dtype=jnp.float32,
                           minval=MIN_VAL, maxval=MAX_VAL)

    ref = _hist_layer_ref(x, num_bins=NUM_BINS, min_val=MIN_VAL,
                          max_val=MAX_VAL, sigma=SIGMA)

    # 1) Exact-precision path (works on every chip): f32 compute, tight check.
    hist_f32 = hist_layer(x, num_bins=NUM_BINS, min_val=MIN_VAL,
                          max_val=MAX_VAL, sigma=SIGMA,
                          compute_dtype=jnp.float32)
    hist_f32 = jax.block_until_ready(hist_f32)
    assert hist_f32.shape == (2, 4, NUM_BINS)
    assert jnp.allclose(hist_f32, ref, atol=1e-5, rtol=1e-4), \
        float(jnp.max(jnp.abs(hist_f32 - ref)))

    # 2) Auto path (bf16 EUP/VPU fast path on v6e/v7x, f32 elsewhere; the
    #    accumulator/normalization stay f32).  Looser tolerance for bf16 input
    #    quantization.
    hist_auto = hist_layer(x, num_bins=NUM_BINS, min_val=MIN_VAL,
                           max_val=MAX_VAL, sigma=SIGMA)
    hist_auto = jax.block_until_ready(hist_auto)
    assert hist_auto.shape == (2, 4, NUM_BINS)
    assert jnp.allclose(hist_auto, ref, atol=2e-2, rtol=5e-2), \
        float(jnp.max(jnp.abs(hist_auto - ref)))

    print("KERNEL_OK")
</pallas_src>

<mosaic_0001>
module attributes {stable_mosaic.version = 11 : i64} {
  func.func @_hist_kernel(%arg0: i32, %arg1: i32, %arg2: i32, %arg3: memref<8x256xf32, #tpu.memory_space<vmem>>, %arg4: memref<1x8x8xf32, #tpu.memory_space<vmem>>, %arg5: memref<8x8xf32, #tpu.memory_space<vmem>>) attributes {dimension_semantics = [#tpu.dimension_semantics<parallel>, #tpu.dimension_semantics<parallel>, #tpu.dimension_semantics<arbitrary>], iteration_bounds = array<i64: 1, 1, 1>, scalar_prefetch = 0 : i64, scratch_operands = 1 : i64, tpu.core_type = #tpu.core_type<tc>, window_params = [{transform_indices = @transform_0, window_bounds = array<i64: 8, 256>}, {transform_indices = @transform_1, window_bounds = array<i64: 1, 8, 8>}]} {
    %c0_i32 = arith.constant 0 : i32
    %0 = arith.cmpi eq, %arg2, %c0_i32 : i32
    %1 = arith.extui %0 : i1 to i32
    %c0_i32_0 = arith.constant 0 : i32
    %2 = arith.cmpi ne, %1, %c0_i32_0 : i32
    scf.if %2 {
      %cst_25 = arith.constant 0.000000e+00 : f32
      %64 = vector.broadcast %cst_25 : f32 to vector<8x8xf32>
      %c0_26 = arith.constant 0 : index
      %c0_27 = arith.constant 0 : index
      %65 = vector.load %arg5[%c0_26, %c0_27] : memref<8x8xf32, #tpu.memory_space<vmem>>, vector<8x8xf32>
      tpu.vector_store %arg5[%c0_26, %c0_27], %64 {strides = array<i32>} : memref<8x8xf32, #tpu.memory_space<vmem>>, vector<8x8xf32>,
    } else {
    }
    %c0 = arith.constant 0 : index
    %c0_1 = arith.constant 0 : index
    %3 = vector.load %arg3[%c0, %c0_1] : memref<8x256xf32, #tpu.memory_space<vmem>>, vector<8x256xf32>
    %cst = arith.constant 8.750000e+00 : f32
    %4 = vector.broadcast %cst : f32 to vector<8x256xf32>
    %5 = arith.mulf %3, %4 : vector<8x256xf32>
    %cst_2 = arith.constant -6.250000e-01 : f32
    %6 = vector.broadcast %cst_2 : f32 to vector<8x256xf32>
    %7 = arith.subf %5, %6 : vector<8x256xf32>
    %8 = math.tanh %7 : vector<8x256xf32>
    %cst_3 = arith.constant 6.250000e-01 : f32
    %9 = vector.broadcast %cst_3 : f32 to vector<8x256xf32>
    %10 = arith.subf %5, %9 : vector<8x256xf32>
    %11 = math.tanh %10 : vector<8x256xf32>
    %12 = arith.subf %8, %11 : vector<8x256xf32>
    %cst_4 = arith.constant dense<0.000000e+00> : vector<8xf32>
    %13 = vector.multi_reduction <add>, %12, %cst_4 [1] : vector<8x256xf32> to vector<8xf32>
    %14 = vector.shape_cast %13 : vector<8xf32> to vector<8x1xf32>
    %cst_5 = arith.constant 1.875000e+00 : f32
    %15 = vector.broadcast %cst_5 : f32 to vector<8x256xf32>
    %16 = arith.subf %5, %15 : vector<8x256xf32>
    %17 = math.tanh %16 : vector<8x256xf32>
    %18 = arith.subf %11, %17 : vector<8x256xf32>
    %cst_6 = arith.constant dense<0.000000e+00> : vector<8xf32>
    %19 = vector.multi_reduction <add>, %18, %cst_6 [1] : vector<8x256xf32> to vector<8xf32>
    %20 = vector.shape_cast %19 : vector<8xf32> to vector<8x1xf32>
    %cst_7 = arith.constant 3.125000e+00 : f32
    %21 = vector.broadcast %cst_7 : f32 to vector<8x256xf32>
    %22 = arith.subf %5, %21 : vector<8x256xf32>
    %23 = math.tanh %22 : vector<8x256xf32>
    %24 = arith.subf %17, %23 : vector<8x256xf32>
    %cst_8 = arith.constant dense<0.000000e+00> : vector<8xf32>
    %25 = vector.multi_reduction <add>, %24, %cst_8 [1] : vector<8x256xf32> to vector<8xf32>
    %26 = vector.shape_cast %25 : vector<8xf32> to vector<8x1xf32>
    %cst_9 = arith.constant 4.375000e+00 : f32
    %27 = vector.broadcast %cst_9 : f32 to vector<8x256xf32>
    %28 = arith.subf %5, %27 : vector<8x256xf32>
    %29 = math.tanh %28 : vector<8x256xf32>
    %30 = arith.subf %23, %29 : vector<8x256xf32>
    %cst_10 = arith.constant dense<0.000000e+00> : vector<8xf32>
    %31 = vector.multi_reduction <add>, %30, %cst_10 [1] : vector<8x256xf32> to vector<8xf32>
    %32 = vector.shape_cast %31 : vector<8xf32> to vector<8x1xf32>
    %cst_11 = arith.constant 5.625000e+00 : f32
    %33 = vector.broadcast %cst_11 : f32 to vector<8x256xf32>
    %34 = arith.subf %5, %33 : vector<8x256xf32>
    %35 = math.tanh %34 : vector<8x256xf32>
    %36 = arith.subf %29, %35 : vector<8x256xf32>
    %cst_12 = arith.constant dense<0.000000e+00> : vector<8xf32>
    %37 = vector.multi_reduction <add>, %36, %cst_12 [1] : vector<8x256xf32> to vector<8xf32>
    %38 = vector.shape_cast %37 : vector<8xf32> to vector<8x1xf32>
    %cst_13 = arith.constant 6.875000e+00 : f32
    %39 = vector.broadcast %cst_13 : f32 to vector<8x256xf32>
    %40 = arith.subf %5, %39 : vector<8x256xf32>
    %41 = math.tanh %40 : vector<8x256xf32>
    %42 = arith.subf %35, %41 : vector<8x256xf32>
    %cst_14 = arith.constant dense<0.000000e+00> : vector<8xf32>
    %43 = vector.multi_reduction <add>, %42, %cst_14 [1] : vector<8x256xf32> to vector<8xf32>
    %44 = vector.shape_cast %43 : vector<8xf32> to vector<8x1xf32>
    %cst_15 = arith.constant 8.125000e+00 : f32
    %45 = vector.broadcast %cst_15 : f32 to vector<8x256xf32>
    %46 = arith.subf %5, %45 : vector<8x256xf32>
    %47 = math.tanh %46 : vector<8x256xf32>
    %48 = arith.subf %41, %47 : vector<8x256xf32>
    %cst_16 = arith.constant dense<0.000000e+00> : vector<8xf32>
    %49 = vector.multi_reduction <add>, %48, %cst_16 [1] : vector<8x256xf32> to vector<8xf32>
    %50 = vector.shape_cast %49 : vector<8xf32> to vector<8x1xf32>
    %cst_17 = arith.constant 9.375000e+00 : f32
    %51 = vector.broadcast %cst_17 : f32 to vector<8x256xf32>
    %52 = arith.subf %5, %51 : vector<8x256xf32>
    %53 = math.tanh %52 : vector<8x256xf32>
    %54 = arith.subf %47, %53 : vector<8x256xf32>
    %cst_18 = arith.constant dense<0.000000e+00> : vector<8xf32>
    %55 = vector.multi_reduction <add>, %54, %cst_18 [1] : vector<8x256xf32> to vector<8xf32>
    %56 = vector.shape_cast %55 : vector<8xf32> to vector<8x1xf32>
    %c0_19 = arith.constant 0 : index
    %c0_20 = arith.constant 0 : index
    %57 = vector.load %arg5[%c0_19, %c0_20] : memref<8x8xf32, #tpu.memory_space<vmem>>, vector<8x8xf32>
    %58 = tpu.concatenate %14, %20, %26, %32, %38, %44, %50, %56 in 1 : vector<8x1xf32>, vector<8x1xf32>, vector<8x1xf32>, vector<8x1xf32>, vector<8x1xf32>, vector<8x1xf32>, vector<8x1xf32>, vector<8x1xf32> -> vector<8x8xf32>
    %59 = arith.addf %57, %58 : vector<8x8xf32>
    %c0_21 = arith.constant 0 : index
    %c0_22 = arith.constant 0 : index
    %60 = vector.load %arg5[%c0_21, %c0_22] : memref<8x8xf32, #tpu.memory_space<vmem>>, vector<8x8xf32>
    tpu.vector_store %arg5[%c0_21, %c0_22], %59 {strides = array<i32>} : memref<8x8xf32, #tpu.memory_space<vmem>>, vector<8x8xf32>,
    %c0_i32_23 = arith.constant 0 : i32
    %61 = arith.cmpi eq, %arg2, %c0_i32_23 : i32
    %62 = arith.extui %61 : i1 to i32
    %c0_i32_24 = arith.constant 0 : i32
    %63 = arith.cmpi ne, %62, %c0_i32_24 : i32
    scf.if %63 {
      %c0_25 = arith.constant 0 : index
      %c0_26 = arith.constant 0 : index
      %64 = vector.load %arg5[%c0_25, %c0_26] : memref<8x8xf32, #tpu.memory_space<vmem>>, vector<8x8xf32>
      %cst_27 = arith.constant 0.001953125 : f32
      %65 = vector.broadcast %cst_27 : f32 to vector<8x8xf32>
      %66 = arith.mulf %64, %65 : vector<8x8xf32>
      %c0_28 = arith.constant 0 : index
      %c0_29 = arith.constant 0 : index
      %c0_30 = arith.constant 0 : index
      %67 = vector.load %arg4[%c0_28, %c0_29, %c0_30] : memref<1x8x8xf32, #tpu.memory_space<vmem>>, vector<1x8x8xf32>
      %68 = vector.shape_cast %67 : vector<1x8x8xf32> to vector<8x8xf32>
      %69 = vector.shape_cast %66 : vector<8x8xf32> to vector<1x8x8xf32>
      tpu.vector_store %arg4[%c0_28, %c0_29, %c0_30], %69 {strides = array<i32>} : memref<1x8x8xf32, #tpu.memory_space<vmem>>, vector<1x8x8xf32>,
    } else {
    }
    return
  }
  func.func @transform_0(%arg0: i32, %arg1: i32, %arg2: i32) -> (i32, i32) {
    %c1_i32 = arith.constant 1 : i32
    %0 = arith.muli %arg0, %c1_i32 : i32
    %1 = arith.addi %0, %arg2 : i32
    %c0_i32 = arith.constant 0 : i32
    return %arg1, %1 : i32, i32
  }
  func.func @transform_1(%arg0: i32, %arg1: i32, %arg2: i32) -> (i32, i32, i32) {
    %c0_i32 = arith.constant 0 : i32
    %c0_i32_0 = arith.constant 0 : i32
    return %arg0, %arg1, %c0_i32 : i32, i32, i32
  }
}

</mosaic_0001>

<llo_original>
// kernel: tpu_custom_call.1
$region0: #{tpu_custom_call.1}
  #allocation0 [shape = 'u32[]', space=smem, size = 0x4, offset = 0x4, fixed_abs, tag = 'smem constant byte address 0x4 - core index']
  #allocation1 [shape = 'u32[144,128]{1,0:T(1,128)}', space=vmem, size = 0x12000, scoped, tag = 'internal scratch']
  #allocation2 [shape = 'f32[8,8]{1,0:T(8,128)}', space=vmem, size = 0x1000, scoped, tag = 'scratch operand']
  %s0 = inlined_call_operand.hbm [shape: f32[8,256], index: 0, kind: input, shape index: {}]
  %s1 = inlined_call_operand.hbm [shape: f32[1,8,8], index: 1, kind: output, shape index: {}]
  %s2 = sld [smem:[#allocation0]]
  $region26: #{tpu_custom_call.1} parent=0
    _
  %s4 = ssub.s32 1, %s2
  %s5 = scalar_select 0, %s4, %s2
  $region1: #{tpu_custom_call.1} parent=0
    #allocation3 [shape = 'u8[8192]{0}', space=vmem, size = 0x2000, scoped, tag = 'input window, operand 0, single buffered']
    #allocation4 [shape = 's32[1]{0}', space=sflag, size = 0x4, scoped, tag = 'scoped memory for tpu_custom_call.1']
    #allocation5 [shape = 's32[1]{0}', space=sflag, size = 0x4, scoped, tag = 'scoped memory for tpu_custom_call.1']
    #allocation6 [shape = 'u8[4096]{0}', space=vmem, size = 0x1000, scoped, tag = 'output window, operand 0, single buffered']
    %6 = vsyncpa [#allocation4], 0
    %7 = vsyncpa [#allocation5], 0
    // Predicated region
    $region2: #{tpu_custom_call.1} parent=1 // pred_check
      _
    $region3: #{tpu_custom_call.1} parent=1 // pred_check_branch
      %9 = sbr.rel (0) target = $region5
    $region4: #{tpu_custom_call.1} parent=1 // pred_region
      %s10 = sadd.s32 0, 0
      %s11 = smul.u32 2, %s10
      %s13 = ssub.s32 256, 256
      %14 = vsyncadd [#allocation4], %s13
      %s15 = smul.addr %s11, 128
      %s16 = scalar_lea.hbm %s0, %s15
      %s18 = sshll.u32 [#allocation3], 4
      %s19 = int_to_ptr.vmem [resolvable:$true] %s18
      %21 = dma.hbm_to_vmem [thread:$0]  %s16, 256, %s19, [#allocation4]
    $region5: #{tpu_custom_call.1} parent=1 // pred_fallthru
      _
    // Predicated region
    $region6: #{tpu_custom_call.1} parent=1 // pred_check
      _
    $region7: #{tpu_custom_call.1} parent=1 // pred_check_branch
      %23 = sbr.rel (0) target = $region9
    $region8: #{tpu_custom_call.1} parent=1 // pred_region
      %24 = dma.done [#allocation4], 256
    $region9: #{tpu_custom_call.1} parent=1 // pred_fallthru
      _
    %s25 = sadd.s32 0, 0
    %s26 = smul.u32 2, %s25
    %p27 = scmp.eq.s32.totalorder 0, 0
    // Predicated region
    $region10: #{tpu_custom_call.1} parent=1 // pred_check
      %p28 = pneg %p27
    $region11: #{tpu_custom_call.1} parent=1 // pred_check_branch
      %30 = sbr.rel (%p28) target = $region13
    $region12: #{tpu_custom_call.1} parent=1 // pred_region
      %vm31 = vcmask 64512
      %32 = vst.msk [vmem:[#allocation2] sm:$0xff] %vm31, 0.0
    $region13: #{tpu_custom_call.1} parent=1 // pred_fallthru
      _
    %v33 = vld [vmem:[#allocation3] sm:$0xff]
    %v34 = vld [vmem:[#allocation3 + $0x8] sm:$0xff]
    %v35 = vmul.f32 %v33, 8.75
    %v36 = vmul.f32 %v34, 8.75
    %v37 = vsub.f32 %v35, -0.625
    %v38 = vsub.f32 %v36, -0.625
    %v39 = vtanh.pop %v37
    %v40 = vtanh.pop %v38
    %v41 = vsub.f32 %v35, 0.625
    %v42 = vsub.f32 %v36, 0.625
    %v43 = vtanh.pop %v41
    %v44 = vtanh.pop %v42
    %v45 = vsub.f32 %v39, %v43
    %v46 = vsub.f32 %v40, %v44
    %v47 = vadd.f32 %v45, %v46
    %48 = vadd.xlane.f32.xlu0 %v47
    %v49 = vpop.xlane.xlu0 %48
    %v50 = vsub.f32 %v35, 1.875
    %v51 = vsub.f32 %v36, 1.875
    %v52 = vtanh.pop %v50
    %v53 = vtanh.pop %v51
    %v54 = vsub.f32 %v43, %v52
    %v55 = vsub.f32 %v44, %v53
    %v56 = vadd.f32 %v54, %v55
    %57 = vadd.xlane.f32.xlu0 %v56
    %v58 = vpop.xlane.xlu0 %57
    %v59 = vsub.f32 %v35, 3.125
    %v60 = vsub.f32 %v36, 3.125
    %v61 = vtanh.pop %v59
    %v62 = vtanh.pop %v60
    %v63 = vsub.f32 %v52, %v61
    %v64 = vsub.f32 %v53, %v62
    %v65 = vadd.f32 %v63, %v64
    %66 = vadd.xlane.f32.xlu0 %v65
    %v67 = vpop.xlane.xlu0 %66
    %v68 = vsub.f32 %v35, 4.375
    %v69 = vsub.f32 %v36, 4.375
    %v70 = vtanh.pop %v68
    %v71 = vtanh.pop %v69
    %v72 = vsub.f32 %v61, %v70
    %v73 = vsub.f32 %v62, %v71
    %v74 = vadd.f32 %v72, %v73
    %75 = vadd.xlane.f32.xlu0 %v74
    %v76 = vpop.xlane.xlu0 %75
    %v77 = vsub.f32 %v35, 5.625
    %v78 = vsub.f32 %v36, 5.625
    %v79 = vtanh.pop %v77
    %v80 = vtanh.pop %v78
    %v81 = vsub.f32 %v70, %v79
    %v82 = vsub.f32 %v71, %v80
    %v83 = vadd.f32 %v81, %v82
    %84 = vadd.xlane.f32.xlu0 %v83
    %v85 = vpop.xlane.xlu0 %84
    %v86 = vsub.f32 %v35, 6.875
    %v87 = vsub.f32 %v36, 6.875
    %v88 = vtanh.pop %v86
    %v89 = vtanh.pop %v87
    %v90 = vsub.f32 %v79, %v88
    %v91 = vsub.f32 %v80, %v89
    %v92 = vadd.f32 %v90, %v91
    %93 = vadd.xlane.f32.xlu0 %v92
    %v94 = vpop.xlane.xlu0 %93
    %v95 = vsub.f32 %v35, 8.125
    %v96 = vsub.f32 %v36, 8.125
    %v97 = vtanh.pop %v95
    %v98 = vtanh.pop %v96
    %v99 = vsub.f32 %v88, %v97
    %v100 = vsub.f32 %v89, %v98
    %v101 = vadd.f32 %v99, %v100
    %102 = vadd.xlane.f32.xlu0 %v101
    %v103 = vpop.xlane.xlu0 %102
    %v104 = vsub.f32 %v35, 9.375
    %v105 = vsub.f32 %v36, 9.375
    %v106 = vtanh.pop %v104
    %v107 = vtanh.pop %v105
    %v108 = vsub.f32 %v97, %v106
    %v109 = vsub.f32 %v98, %v107
    %v110 = vadd.f32 %v108, %v109
    %111 = vadd.xlane.f32.xlu0 %v110
    %v112 = vpop.xlane.xlu0 %111
    %v113 = vld [vmem:[#allocation2] sm:$0xff]
    %vm114 = vcmask 7168
    %v115 = vsel %vm114, %v49, %v58
    %vm116 = vcmask 15360
    %v117 = vsel %vm116, %v115, %v67
    %vm118 = vcmask 23552
    %v119 = vsel %vm118, %v117, %v76
    %vm120 = vcmask 31744
    %v121 = vsel %vm120, %v119, %v85
    %vm122 = vcmask 39936
    %v123 = vsel %vm122, %v121, %v94
    %vm124 = vcmask 48128
    %v125 = vsel %vm124, %v123, %v103
    %vm126 = vcmask 56320
    %v127 = vsel %vm126, %v125, %v112
    %v128 = vadd.f32 %v113, %v127
    %vm129 = vcmask 64512
    %130 = vst.msk [vmem:[#allocation2] sm:$0xff] %vm129, %v128
    // Predicated region
    $region14: #{tpu_custom_call.1} parent=1 // pred_check
      %p131 = pneg %p27
    $region15: #{tpu_custom_call.1} parent=1 // pred_check_branch
      %133 = sbr.rel (%p131) target = $region17
    $region16: #{tpu_custom_call.1} parent=1 // pred_region
      %v134 = vld [vmem:[#allocation2] sm:$0xff]
      %v135 = vmul.f32 %v134, 0.001953125
      %136 = vst.msk [vmem:[#allocation6] sm:$0xff] %vm129, %v135
    $region17: #{tpu_custom_call.1} parent=1 // pred_fallthru
      _
    // Predicated region
    $region18: #{tpu_custom_call.1} parent=1 // pred_check
      _
    $region19: #{tpu_custom_call.1} parent=1 // pred_check_branch
      %138 = sbr.rel (0) target = $region21
    $region20: #{tpu_custom_call.1} parent=1 // pred_region
      %s140 = ssub.s32 128, 128
      %141 = vsyncadd [#allocation5], %s140
      %s143 = sshll.u32 [#allocation6], 4
      %s144 = int_to_ptr.vmem [resolvable:$true] %s143
      %146 = dma.vmem_to_hbm [thread:$0]  %s144, 128, %s1, [#allocation5]
    $region21: #{tpu_custom_call.1} parent=1 // pred_fallthru
      _
    // Predicated region
    $region22: #{tpu_custom_call.1} parent=1 // pred_check
      _
    $region23: #{tpu_custom_call.1} parent=1 // pred_check_branch
      %148 = sbr.rel (0) target = $region25
    $region24: #{tpu_custom_call.1} parent=1 // pred_region
      %149 = dma.done [#allocation5], 128
    $region25: #{tpu_custom_call.1} parent=1 // pred_fallthru
      _
    %150 = vsyncpa [#allocation4], 1
    %151 = vsyncpa [#allocation5], 1

</llo_original>
